<compile_context>
chip_gen: v7x
topology: tpu7x:2x2x1
jax: 0.10.0
libtpu: 0.0.40
codegen_flags: <defaults>
</compile_context>

<pallas_src>
import functools

import jax
import jax.numpy as jnp
from jax.experimental import pallas as pl
from jax.experimental.pallas import tpu as pltpu


def _ln_center_kernel(x_ref, params_ref, o_ref, *, eps, inv_h):
    # x_ref: (tile_rows, H); params_ref: (2, H) f32 = [gamma ; beta - mean(beta)].
    #
    # Invariant for the partial last block: the trailing rows of x_ref may hold
    # unspecified data (grid does not divide the row count).  Every row below is
    # computed independently and Pallas masks the corresponding output rows on
    # writeback, so garbage cannot leak into valid rows.
    x = x_ref[...].astype(jnp.float32)
    gamma = params_ref[0:1, :]     # (1, H) broadcasts over rows
    beta_c = params_ref[1:2, :]    # beta - mean(beta), precomputed in wrapper

    # LayerNorm statistics over the last dim (biased variance, like nn.LayerNorm).
    mean = jnp.sum(x, axis=-1, keepdims=True) * inv_h
    xc = x - mean
    var = jnp.sum(xc * xc, axis=-1, keepdims=True) * inv_h
    r = jax.lax.rsqrt(var + eps)                      # per-row scale

    # Folded LN_ centering:
    #   out = xc*r*gamma + beta ;  out -= mean(out)
    # == (t - mean(t)) * r + (beta - mean(beta)),  with t = xc * gamma
    t = xc * gamma
    t_mean = jnp.sum(t, axis=-1, keepdims=True) * inv_h
    out = (t - t_mean) * r + beta_c

    o_ref[...] = out.astype(o_ref.dtype)


def _sublane_multiple(dtype):
    # f32 -> 8, bf16 -> 16, int8/fp8 -> 32 (sub-32-bit dtypes pack along sublanes).
    itemsize = jnp.dtype(dtype).itemsize
    return max(8, 32 // itemsize)


def _vmem_capacity_bytes():
    # Generation-aware VMEM capacity; fall back to the smallest (v7x, 64 MiB)
    # if the query is unavailable, which is always safe.
    try:
        info = pltpu.get_tpu_info()
        cap = int(getattr(info, "vmem_capacity_bytes", 64 << 20))
        if cap > 0:
            return cap
    except Exception:
        pass
    return 64 << 20


def ln_rot_wrapper_forward(x, gamma, beta, *, eps=1e-5, tile_rows=None):
    """x: (..., H) array. Returns same shape/dtype as x."""
    orig_shape = x.shape
    orig_dtype = x.dtype
    H = orig_shape[-1]
    x2 = x.reshape(-1, H)
    R = x2.shape[0]

    sub = _sublane_multiple(orig_dtype)
    itemsize = jnp.dtype(orig_dtype).itemsize

    vmem_cap = _vmem_capacity_bytes()
    if vmem_cap <= (64 << 20):
        # v7x-class part: leave headroom for Mosaic internal scratch.
        vmem_limit_cap = 46 << 20
        target_block_bytes = 6 << 20
    else:
        # v5e / v6e: 128 MiB physical, scoped default is only 16/32 MiB.
        vmem_limit_cap = 96 << 20
        target_block_bytes = 8 << 20

    # Resident VMEM per tile row:
    #   2x input block + 2x output block (double buffered): 4 * H * itemsize
    #   ~3 f32 intermediates (x32 / xc / t) held across row reductions: 3 * H * 4
    bytes_per_row_resident = 4 * H * itemsize + 3 * H * 4

    if tile_rows is None:
        bytes_per_row_in = H * itemsize
        rows_by_target = max(sub, target_block_bytes // bytes_per_row_in)
        rows_by_budget = max(sub, (vmem_limit_cap - (4 << 20)) // bytes_per_row_resident)
        tile_rows = int(min(rows_by_target, rows_by_budget))
        tile_rows = max(sub, (tile_rows // sub) * sub)   # sublane-aligned

    # Never tile wider than the (sublane-rounded) row count.
    r_rounded = pl.cdiv(R, sub) * sub
    tile_rows = min(tile_rows, r_rounded)

    # Megacore (v7x): if everything would land in one block but the rows can be
    # split, halve the tile so the "parallel" grid has >=2 points to shard.
    if tile_rows >= R and R > sub:
        half = pl.cdiv(R, 2)
        tile_rows = max(sub, pl.cdiv(half, sub) * sub)

    n_blocks = pl.cdiv(R, tile_rows)   # partial last block is handled by Pallas

    # Pack LayerNorm parameters into one f32 (2, H) input: [gamma ; beta - mean(beta)].
    gamma32 = gamma.reshape(1, H).astype(jnp.float32)
    beta32 = beta.astype(jnp.float32)
    beta_c = (beta32 - jnp.mean(beta32)).reshape(1, H)
    params = jnp.concatenate([gamma32, beta_c], axis=0)   # (2, H) f32

    # Scoped VMEM limit: accurate accounting (incl. f32 temps) + headroom,
    # capped per generation.
    block_in_bytes = tile_rows * H * itemsize
    needed = 4 * block_in_bytes + 3 * tile_rows * H * 4 + 2 * (2 * H * 4)
    vmem_limit = int(min(max(needed + (4 << 20), 24 << 20), vmem_limit_cap))

    kernel = functools.partial(_ln_center_kernel, eps=eps, inv_h=1.0 / H)

    out = pl.pallas_call(
        kernel,
        out_shape=jax.ShapeDtypeStruct((R, H), orig_dtype),
        grid_spec=pltpu.PrefetchScalarGridSpec(
            num_scalar_prefetch=0,
            grid=(n_blocks,),
            in_specs=[
                pl.BlockSpec((tile_rows, H), lambda i: (i, 0)),  # x rows tile
                pl.BlockSpec((2, H), lambda i: (0, 0)),          # [gamma; beta_c]
            ],
            out_specs=pl.BlockSpec((tile_rows, H), lambda i: (i, 0)),
        ),
        compiler_params=pltpu.CompilerParams(
            dimension_semantics=("parallel",),   # v7x: shard row-grid over 2 TCs
            vmem_limit_bytes=vmem_limit,
        ),
    )(x2, params)

    return out.reshape(orig_shape)


def _reference(x, gamma, beta, eps=1e-5):
    x32 = x.astype(jnp.float32)
    mean = jnp.mean(x32, axis=-1, keepdims=True)
    var = jnp.mean((x32 - mean) ** 2, axis=-1, keepdims=True)
    out = (x32 - mean) * jax.lax.rsqrt(var + eps) * gamma.astype(jnp.float32) \
          + beta.astype(jnp.float32)
    out = out - jnp.mean(out, axis=-1, keepdims=True)
    return out.astype(x.dtype)


if __name__ == "__main__":
    key = jax.random.PRNGKey(0)
    k_x, k_g, k_b, k_x2 = jax.random.split(key, 4)

    B, S, H = 2, 8, 32          # batch=2, seq=8, hidden=32
    x = jax.random.normal(k_x, (B, S, H), dtype=jnp.float32)

    # Deterministic LayerNorm parameters (synthetic, not loaded from checkpoint).
    gamma = 1.0 + 0.1 * jax.random.normal(k_g, (H,), dtype=jnp.float32)
    beta = 0.05 * jax.random.normal(k_b, (H,), dtype=jnp.float32)

    y = ln_rot_wrapper_forward(x, gamma, beta)
    y = jax.block_until_ready(y)

    y_ref = _reference(x, gamma, beta)
    assert y.shape == x.shape and y.dtype == x.dtype
    assert jnp.allclose(y, y_ref, atol=1e-5, rtol=1e-5)

    # Second case: row count that does NOT divide the tile (exercises the
    # non-padded partial-last-block path).
    B2, S2 = 3, 5               # rows = 15
    x_odd = jax.random.normal(k_x2, (B2, S2, H), dtype=jnp.float32)
    y_odd = jax.block_until_ready(ln_rot_wrapper_forward(x_odd, gamma, beta))
    assert y_odd.shape == x_odd.shape and y_odd.dtype == x_odd.dtype
    assert jnp.allclose(y_odd, _reference(x_odd, gamma, beta), atol=1e-5, rtol=1e-5)

    print("KERNEL_OK")
</pallas_src>

<mosaic_0001>
module attributes {stable_mosaic.version = 11 : i64} {
  func.func @_ln_center_kernel(%arg0: i32, %arg1: memref<8x32xf32, #tpu.memory_space<vmem>>, %arg2: memref<2x32xf32, #tpu.memory_space<vmem>>, %arg3: memref<8x32xf32, #tpu.memory_space<vmem>>) attributes {dimension_semantics = [#tpu.dimension_semantics<parallel>], iteration_bounds = array<i64: 2>, scalar_prefetch = 0 : i64, scratch_operands = 0 : i64, tpu.core_type = #tpu.core_type<tc>, window_params = [{transform_indices = @transform_0, window_bounds = array<i64: 8, 32>}, {pipeline_mode = #tpu.pipeline_mode<synchronous>, transform_indices = @transform_1, window_bounds = array<i64: 2, 32>}, {transform_indices = @transform_2, window_bounds = array<i64: 8, 32>}]} {
    %c0 = arith.constant 0 : index
    %c0_0 = arith.constant 0 : index
    %0 = vector.load %arg1[%c0, %c0_0] : memref<8x32xf32, #tpu.memory_space<vmem>>, vector<8x32xf32>
    %c0_1 = arith.constant 0 : index
    %c0_2 = arith.constant 0 : index
    %1 = vector.load %arg2[%c0_1, %c0_2] : memref<2x32xf32, #tpu.memory_space<vmem>>, vector<1x32xf32>
    %c1 = arith.constant 1 : index
    %c0_3 = arith.constant 0 : index
    %2 = vector.load %arg2[%c1, %c0_3] : memref<2x32xf32, #tpu.memory_space<vmem>>, vector<1x32xf32>
    %cst = arith.constant dense<0.000000e+00> : vector<8xf32>
    %3 = vector.multi_reduction <add>, %0, %cst [1] : vector<8x32xf32> to vector<8xf32>
    %4 = vector.shape_cast %3 : vector<8xf32> to vector<8x1xf32>
    %cst_4 = arith.constant 3.125000e-02 : f32
    %5 = vector.broadcast %cst_4 : f32 to vector<8x1xf32>
    %6 = arith.mulf %4, %5 : vector<8x1xf32>
    %7 = vector.broadcast %6 : vector<8x1xf32> to vector<8x32xf32>
    %8 = arith.subf %0, %7 : vector<8x32xf32>
    %9 = arith.mulf %8, %8 : vector<8x32xf32>
    %cst_5 = arith.constant dense<0.000000e+00> : vector<8xf32>
    %10 = vector.multi_reduction <add>, %9, %cst_5 [1] : vector<8x32xf32> to vector<8xf32>
    %11 = vector.shape_cast %10 : vector<8xf32> to vector<8x1xf32>
    %cst_6 = arith.constant 3.125000e-02 : f32
    %12 = vector.broadcast %cst_6 : f32 to vector<8x1xf32>
    %13 = arith.mulf %11, %12 : vector<8x1xf32>
    %cst_7 = arith.constant 9.99999974E-6 : f32
    %14 = vector.broadcast %cst_7 : f32 to vector<8x1xf32>
    %15 = arith.addf %13, %14 : vector<8x1xf32>
    %16 = math.rsqrt %15 : vector<8x1xf32>
    %17 = vector.broadcast %1 : vector<1x32xf32> to vector<8x32xf32>
    %18 = arith.mulf %8, %17 : vector<8x32xf32>
    %cst_8 = arith.constant dense<0.000000e+00> : vector<8xf32>
    %19 = vector.multi_reduction <add>, %18, %cst_8 [1] : vector<8x32xf32> to vector<8xf32>
    %20 = vector.shape_cast %19 : vector<8xf32> to vector<8x1xf32>
    %cst_9 = arith.constant 3.125000e-02 : f32
    %21 = vector.broadcast %cst_9 : f32 to vector<8x1xf32>
    %22 = arith.mulf %20, %21 : vector<8x1xf32>
    %23 = vector.broadcast %22 : vector<8x1xf32> to vector<8x32xf32>
    %24 = arith.subf %18, %23 : vector<8x32xf32>
    %25 = vector.broadcast %16 : vector<8x1xf32> to vector<8x32xf32>
    %26 = arith.mulf %24, %25 : vector<8x32xf32>
    %27 = vector.broadcast %2 : vector<1x32xf32> to vector<8x32xf32>
    %28 = arith.addf %26, %27 : vector<8x32xf32>
    %c0_10 = arith.constant 0 : index
    %c0_11 = arith.constant 0 : index
    %29 = vector.load %arg3[%c0_10, %c0_11] : memref<8x32xf32, #tpu.memory_space<vmem>>, vector<8x32xf32>
    tpu.vector_store %arg3[%c0_10, %c0_11], %28 {strides = array<i32>} : memref<8x32xf32, #tpu.memory_space<vmem>>, vector<8x32xf32>,
    return
  }
  func.func @transform_0(%arg0: i32) -> (i32, i32) {
    %c0_i32 = arith.constant 0 : i32
    %c0_i32_0 = arith.constant 0 : i32
    return %arg0, %c0_i32 : i32, i32
  }
  func.func @transform_1(%arg0: i32) -> (i32, i32) {
    %c0_i32 = arith.constant 0 : i32
    %c0_i32_0 = arith.constant 0 : i32
    %c0_i32_1 = arith.constant 0 : i32
    return %c0_i32, %c0_i32_0 : i32, i32
  }
  func.func @transform_2(%arg0: i32) -> (i32, i32) {
    %c0_i32 = arith.constant 0 : i32
    %c0_i32_0 = arith.constant 0 : i32
    return %arg0, %c0_i32 : i32, i32
  }
}

</mosaic_0001>

<llo_original>
// kernel: tpu_custom_call.1
$region0: #{tpu_custom_call.1}
  #allocation0 [shape = 'u32[]', space=smem, size = 0x4, offset = 0x4, fixed_abs, tag = 'smem constant byte address 0x4 - core index']
  #allocation1 [shape = 'u32[144,128]{1,0:T(1,128)}', space=vmem, size = 0x12000, scoped, tag = 'internal scratch']
  %s0 = inlined_call_operand.hbm [shape: f32[16,32], index: 0, kind: input, shape index: {}]
  %s1 = inlined_call_operand.vmem [shape: f32[2,32], index: 1, kind: input, shape index: {}]
  %s2 = inlined_call_operand.hbm [shape: f32[16,32], index: 2, kind: output, shape index: {}]
  %s3 = sld [smem:[#allocation0]]
  $region45: #{tpu_custom_call.1} parent=0
    _
  %s5 = ssub.s32 1, %s3
  %s6 = scalar_select 0, %s5, %s3
  $region1: #{tpu_custom_call.1} parent=0
    #allocation2 [shape = 'u8[8192]{0}', space=vmem, size = 0x2000, scoped, tag = 'input window, operand 0']
    #allocation3 [shape = 's32[2]{0}', space=sflag, size = 0x8, scoped, tag = 'scoped memory for tpu_custom_call.1']
    #allocation4 [shape = 's32[2]{0}', space=sflag, size = 0x8, scoped, tag = 'scoped memory for tpu_custom_call.1']
    #allocation5 [shape = 'u8[8192]{0}', space=vmem, size = 0x2000, scoped, tag = 'output window, operand 0']
    %7 = vsyncpa [#allocation3], 0
    %s8 = scalar_lea.sflag [#allocation3], 1
    %9 = vsyncpa %s8, 0
    %10 = vsyncpa [#allocation4], 0
    %s11 = scalar_lea.sflag [#allocation4], 1
    %12 = vsyncpa %s11, 0
    loop: start=0, step=1, limit=4
    $region2: #{tpu_custom_call.1} parent=1 // loop_pre_header
      _
    $region3: #{tpu_custom_call.1} parent=1 // loop_header
      %s14 = sphi 0, %s18
      %p15 = scmp.ge.s32.totalorder %s14, 4
      %s24 = sphi 0, %s26
      %s27 = sphi 0, %s24
      %s28 = sphi 0, %s27
      %s44 = sphi 0, %s28
      %s48 = sphi 0, %s48
      %s50 = sphi 0, %s48
      %s51 = sphi 0, %s50
      %s65 = sphi 0, %s51
      %s71 = sphi 0, %s73
      %s74 = sphi 0, %s71
      %s75 = sphi 0, %s74
      %s91 = sphi 0, %s75
    $region4: #{tpu_custom_call.1} parent=1 // loop_header_branch
      %17 = sbr.rel (%p15) target = $region8
    $region5: #{tpu_custom_call.1} parent=1 // loop_body
      %s19 = ssub.s32 %s14, 1
      %s20 = ssub.s32 %s14, 2
      %s21 = sadd.s32 %s14, 1
      %s22 = ssub.s32 %s14, %s21
      %p23 = scmp.eq.s32.totalorder %s22, 0
      %s25 = sadd.s32 %s24, 1
      %s26 = scalar_select %p23, %s24, %s25
      %p29 = pneg %p23
      %p30 = scmp.eq.s32.totalorder %s14, 1
      %p31 = por %p29, %p30
      %p32 = scmp.ne.s32.totalorder %s24, %s27
      %p33 = scmp.eq.s32.totalorder %s14, 0
      %p34 = por %p32, %p33
      %p35 = scmp.ne.s32.totalorder %s24, %s27
      %p36 = scmp.eq.s32.totalorder %s19, 1
      %p37 = por %p35, %p36
      %p38 = scmp.ne.s32.totalorder %s27, %s28
      %p39 = scmp.eq.s32.totalorder %s19, 0
      %p40 = por %p38, %p39
      %p41 = scmp.ne.s32.totalorder %s27, %s28
      %p42 = scmp.eq.s32.totalorder %s20, 1
      %p43 = por %p41, %p42
      %p45 = scmp.ne.s32.totalorder %s28, %s44
      %p46 = scmp.eq.s32.totalorder %s20, 0
      %p47 = por %p45, %p46
      %s49 = sadd.s32 %s48, 1
      %p52 = scmp.eq.s32.totalorder %s14, 1
      %p53 = scmp.ne.s32.totalorder %s48, %s50
      %p54 = scmp.eq.s32.totalorder %s14, 0
      %p55 = por %p53, %p54
      %p56 = scmp.ne.s32.totalorder %s48, %s50
      %p57 = scmp.eq.s32.totalorder %s19, 1
      %p58 = por %p56, %p57
      %p59 = scmp.ne.s32.totalorder %s50, %s51
      %p60 = scmp.eq.s32.totalorder %s19, 0
      %p61 = por %p59, %p60
      %p62 = scmp.ne.s32.totalorder %s50, %s51
      %p63 = scmp.eq.s32.totalorder %s20, 1
      %p64 = por %p62, %p63
      %p66 = scmp.ne.s32.totalorder %s51, %s65
      %p67 = scmp.eq.s32.totalorder %s20, 0
      %p68 = por %p66, %p67
      %s69 = ssub.s32 %s14, %s21
      %p70 = scmp.eq.s32.totalorder %s69, 0
      %s72 = sadd.s32 %s71, 1
      %s73 = scalar_select %p70, %s71, %s72
      %p76 = pneg %p70
      %p77 = scmp.eq.s32.totalorder %s14, 1
      %p78 = por %p76, %p77
      %p79 = scmp.ne.s32.totalorder %s71, %s74
      %p80 = scmp.eq.s32.totalorder %s14, 0
      %p81 = por %p79, %p80
      %p82 = scmp.ne.s32.totalorder %s71, %s74
      %p83 = scmp.eq.s32.totalorder %s19, 1
      %p84 = por %p82, %p83
      %p85 = scmp.ne.s32.totalorder %s74, %s75
      %p86 = scmp.eq.s32.totalorder %s19, 0
      %p87 = por %p85, %p86
      %p88 = scmp.ne.s32.totalorder %s74, %s75
      %p89 = scmp.eq.s32.totalorder %s20, 1
      %p90 = por %p88, %p89
      %p92 = scmp.ne.s32.totalorder %s75, %s91
      %p93 = scmp.eq.s32.totalorder %s20, 0
      %p94 = por %p92, %p93
      %p95 = scmp.le.s32.totalorder 1, %s14
      %p96 = scmp.lt.s32.totalorder %s14, 3
      %p97 = pnand %p95, %p96
      %p98 = pneg %p97
      // Predicated region
      $region9: #{tpu_custom_call.1} parent=5 // pred_check
        _
      $region10: #{tpu_custom_call.1} parent=5 // pred_check_branch
        %100 = sbr.rel (%p97) target = $region12
      $region11: #{tpu_custom_call.1} parent=5 // pred_region
        %s101 = ssub.s32 %s14, 1
        // Predicated region
        $region13: #{tpu_custom_call.1} parent=11 // pred_check
          %p102 = pneg %p61
        $region14: #{tpu_custom_call.1} parent=11 // pred_check_branch
          %104 = sbr.rel (%p102) target = $region16
        $region15: #{tpu_custom_call.1} parent=11 // pred_region
          _
        $region16: #{tpu_custom_call.1} parent=11 // pred_fallthru
          _
      $region12: #{tpu_custom_call.1} parent=5 // pred_fallthru
        _
      %p105 = scmp.lt.s32.totalorder %s14, 2
      // Predicated region
      $region17: #{tpu_custom_call.1} parent=5 // pred_check
        %p106 = pneg %p105
      $region18: #{tpu_custom_call.1} parent=5 // pred_check_branch
        %108 = sbr.rel (%p106) target = $region20
      $region19: #{tpu_custom_call.1} parent=5 // pred_region
        // Predicated region
        $region21: #{tpu_custom_call.1} parent=19 // pred_check
          %p109 = pneg %p34
        $region22: #{tpu_custom_call.1} parent=19 // pred_check_branch
          %111 = sbr.rel (%p109) target = $region24
        $region23: #{tpu_custom_call.1} parent=19 // pred_region
          %s112 = sand.u32 %s24, 1
          %s113 = scalar_lea.sflag [#allocation3], %s112
          %s114 = sand.u32 %s24, 1
          %s115 = smul.addr %s114, 8
          %s116 = scalar_lea.vmem [#allocation2], %s115
          %s118 = ssub.s32 128, 128
          %119 = vsyncadd %s113, %s118
          %s120 = smul.addr %s14, 128
          %s121 = scalar_lea.hbm %s0, %s120
          %s123 = sshll.u32 %s116, 4
          %s124 = int_to_ptr.vmem [resolvable:$true] %s123
          %126 = dma.hbm_to_vmem [thread:$0]  %s121, 128, %s124, %s113
        $region24: #{tpu_custom_call.1} parent=19 // pred_fallthru
          _
      $region20: #{tpu_custom_call.1} parent=5 // pred_fallthru
        _
      %p127 = scmp.le.s32.totalorder 1, %s14
      %p128 = scmp.lt.s32.totalorder %s14, 3
      %p129 = pnand %p127, %p128
      %p130 = pneg %p129
      // Predicated region
      $region25: #{tpu_custom_call.1} parent=5 // pred_check
        _
      $region26: #{tpu_custom_call.1} parent=5 // pred_check_branch
        %132 = sbr.rel (%p129) target = $region28
      $region27: #{tpu_custom_call.1} parent=5 // pred_region
        %s133 = ssub.s32 %s14, 1
        %s134 = sand.u32 %s27, 1
        %s135 = scalar_lea.sflag [#allocation3], %s134
        %s136 = sand.u32 %s27, 1
        %s137 = smul.addr %s136, 8
        %s138 = scalar_lea.vmem [#allocation2], %s137
        // Predicated region
        $region29: #{tpu_custom_call.1} parent=27 // pred_check
          %p139 = pneg %p40
        $region30: #{tpu_custom_call.1} parent=27 // pred_check_branch
          %141 = sbr.rel (%p139) target = $region32
        $region31: #{tpu_custom_call.1} parent=27 // pred_region
          %142 = dma.done %s135, 128
        $region32: #{tpu_custom_call.1} parent=27 // pred_fallthru
          _
        %s143 = sand.u32 %s27, 1
        %s144 = scalar_lea.sflag [#allocation3], %s143
        %s145 = sand.u32 %s27, 1
        %s146 = smul.addr %s145, 8
        %s147 = scalar_lea.vmem [#allocation2], %s146
        %p148 = pneg %p40
        %p149 = pneg %p37
        %p150 = pneg %p61
        %p151 = pneg %p58
        %p152 = pneg %p87
        %p153 = pneg %p84
        %s154 = sand.u32 %s74, 1
        %s155 = scalar_lea.sflag [#allocation4], %s154
        %s156 = sand.u32 %s74, 1
        %s157 = smul.addr %s156, 8
        %s158 = scalar_lea.vmem [#allocation5], %s157
        %v159 = vld [vmem:[%s138] sm:$0xff]
        %v160 = vld [vmem:[%s1] sm:$0x1]
        %v161 = vld [vmem:[%s1 + $0x1] sm:$0x1]
        %vm162 = vcmask 261120
        %v163 = vsel %vm162, %v159, 0.0
        %164 = vadd.xlane.f32.xlu0 %v163
        %v165 = vpop.xlane.xlu0 %164
        %v166 = vmul.f32 %v165, 0.03125
        %v167 = vsub.f32 %v159, %v166
        %v168 = vmul.f32 %v167, %v167
        %v169 = vsel %vm162, %v168, 0.0
        %170 = vadd.xlane.f32.xlu0 %v169
        %v171 = vpop.xlane.xlu0 %170
        %v172 = vmul.f32 %v171, 0.03125
        %v173 = vadd.f32 %v172, 1e-05
        %v174 = vrsqrt.pop %v173
        %v175 = vlaneseq
        %v176 = vshrl.u32 %v175, 7
        %v177 = vsub.s32 0, %v176
        %v178 = vrot.slane %v160, %v177
        %v179 = vmul.f32 %v167, %v178
        %v180 = vsel %vm162, %v179, 0.0
        %181 = vadd.xlane.f32.xlu0 %v180
        %v182 = vpop.xlane.xlu0 %181
        %v183 = vmul.f32 %v182, 0.03125
        %v184 = vsub.f32 %v179, %v183
        %v185 = vmul.f32 %v184, %v174
        %v186 = vlaneseq
        %v187 = vshrl.u32 %v186, 7
        %v188 = vsub.s32 0, %v187
        %v189 = vrot.slane %v161, %v188
        %v190 = vadd.f32 %v185, %v189
        %191 = vst.msk [vmem:[%s158] sm:$0xff] %vm162, %v190
        %s192 = sand.u32 %s74, 1
        %s193 = scalar_lea.sflag [#allocation4], %s192
        %s194 = sand.u32 %s74, 1
        %s195 = smul.addr %s194, 8
        %s196 = scalar_lea.vmem [#allocation5], %s195
        // Predicated region
        $region33: #{tpu_custom_call.1} parent=27 // pred_check
          %p197 = pneg %p84
        $region34: #{tpu_custom_call.1} parent=27 // pred_check_branch
          %199 = sbr.rel (%p197) target = $region36
        $region35: #{tpu_custom_call.1} parent=27 // pred_region
          %s201 = ssub.s32 128, 128
          %202 = vsyncadd %s193, %s201
          %s203 = smul.addr %s19, 128
          %s204 = scalar_lea.hbm %s2, %s203
          %s206 = sshll.u32 %s196, 4
          %s207 = int_to_ptr.vmem [resolvable:$true] %s206
          %209 = dma.vmem_to_hbm [thread:$0]  %s207, 128, %s204, %s193
        $region36: #{tpu_custom_call.1} parent=27 // pred_fallthru
          _
      $region28: #{tpu_custom_call.1} parent=5 // pred_fallthru
        _
      %p210 = scmp.le.s32.totalorder 2, %s14
      // Predicated region
      $region37: #{tpu_custom_call.1} parent=5 // pred_check
        %p211 = pneg %p210
      $region38: #{tpu_custom_call.1} parent=5 // pred_check_branch
        %213 = sbr.rel (%p211) target = $region40
      $region39: #{tpu_custom_call.1} parent=5 // pred_region
        %s214 = ssub.s32 %s14, 2
        // Predicated region
        $region41: #{tpu_custom_call.1} parent=39 // pred_check
          %p215 = pneg %p90
        $region42: #{tpu_custom_call.1} parent=39 // pred_check_branch
          %217 = sbr.rel (%p215) target = $region44
        $region43: #{tpu_custom_call.1} parent=39 // pred_region
          %s218 = sand.u32 %s75, 1
          %s219 = scalar_lea.sflag [#allocation4], %s218
          %s220 = sand.u32 %s75, 1
          %s221 = smul.addr %s220, 8
          %s222 = scalar_lea.vmem [#allocation5], %s221
          %223 = dma.done %s219, 128
        $region44: #{tpu_custom_call.1} parent=39 // pred_fallthru
          _
      $region40: #{tpu_custom_call.1} parent=5 // pred_fallthru
        _
    $region6: #{tpu_custom_call.1} parent=1 // loop_footer
      %s18 = sadd.s32 1, %s14
    $region7: #{tpu_custom_call.1} parent=1 // loop_footer_branch
      %13 = sbr.rel target = $region3
    $region8: #{tpu_custom_call.1} parent=1 // loop_exit
      _
    %224 = vsyncpa [#allocation3], 1
    %s225 = scalar_lea.sflag [#allocation3], 1
    %226 = vsyncpa %s225, 1
    %227 = vsyncpa [#allocation4], 1
    %s228 = scalar_lea.sflag [#allocation4], 1
    %229 = vsyncpa %s228, 1

</llo_original>
